<compile_context>
chip_gen: v7x
topology: tpu7x:2x2x1
jax: 0.10.0
libtpu: 0.0.40
codegen_flags: <defaults>
</compile_context>

<pallas_src>
import functools

import jax
import jax.numpy as jnp
from jax import lax
from jax.experimental import pallas as pl
from jax.experimental.pallas import tpu as pltpu

KW = 4                 # kernel size
PADW = 2               # int(ceil((4-1)/2))
BN_EPS = 1e-5
LRELU_SLOPE = 0.2

VMEM_LIMIT = 32 * 1024 * 1024       # scoped VMEM budget, safe on v5e/v6e/v7x
STREAM_BUDGET = 12 * 1024 * 1024    # budget for the double-buffered streamed blocks


def _round_up(x, m):
    return ((x + m - 1) // m) * m


def _pick_tile_m(m, k, cout):
    """Largest multiple-of-128 M-tile whose double-buffered streams fit the budget."""
    per_row = 2 * (2 * k) + 2 * (4 * cout)   # bf16 patches + f32 out, double buffered
    t = (STREAM_BUDGET // max(per_row, 1)) // 128 * 128
    t = max(128, min(1024, t))
    return min(t, _round_up(m, 128))


# ----------------------------------------------------------------------------
# Pallas kernels
# ----------------------------------------------------------------------------
def _conv_bias_kernel(x_ref, w_ref, b_ref, o_ref, *, use_act):
    """Tiled (bf16 x bf16 -> f32) matmul + bias (+ LeakyReLU)."""
    y = jnp.dot(x_ref[...], w_ref[...], preferred_element_type=jnp.float32)
    y = y + b_ref[...]
    if use_act:
        y = jnp.where(y > 0, y, LRELU_SLOPE * y)
    o_ref[...] = y


def _conv_stats_kernel(x_ref, w_ref, y_ref, sum_ref, ssq_ref):
    """Pass 1 for BN layers: matmul (no bias) + per-tile channel sum / sum-of-squares."""
    y = jnp.dot(x_ref[...], w_ref[...], preferred_element_type=jnp.float32)
    y_ref[...] = y
    sum_ref[0] = jnp.sum(y, axis=0, keepdims=True)
    ssq_ref[0] = jnp.sum(y * y, axis=0, keepdims=True)


def _scale_shift_act_kernel(y_ref, sc_ref, sh_ref, o_ref, *, use_act):
    """Pass 2 for BN layers: lane-dense y*scale + shift (+ LeakyReLU)."""
    y = y_ref[...] * sc_ref[...] + sh_ref[...]
    if use_act:
        y = jnp.where(y > 0, y, LRELU_SLOPE * y)
    o_ref[...] = y


# ----------------------------------------------------------------------------
# im2col glue (plain JAX)
# ----------------------------------------------------------------------------
# TODO(synk): the im2col patch gather is left as XLA glue (16x activation blow-up in
# HBM); fusing it into the kernel needs manual strided DMA over the padded activation.
def _im2col(x_nhwc, stride):
    n, h, w, cin = x_nhwc.shape
    xp = jnp.pad(x_nhwc, ((0, 0), (PADW, PADW), (PADW, PADW), (0, 0)))
    ho = (h + 2 * PADW - KW) // stride + 1
    wo = (w + 2 * PADW - KW) // stride + 1
    cols = []
    for ki in range(KW):
        for kj in range(KW):
            cols.append(xp[:, ki:ki + stride * ho:stride,
                           kj:kj + stride * wo:stride, :])      # (N,Ho,Wo,Cin)
    patches = jnp.stack(cols, axis=3)                           # (N,Ho,Wo,KW*KW,Cin)
    return patches.reshape(n * ho * wo, KW * KW * cin), ho, wo


# ----------------------------------------------------------------------------
# One discriminator layer
# ----------------------------------------------------------------------------
def conv_layer_pallas(x_nhwc, w_oihw, b, gamma, beta, *, stride, use_act):
    """x_nhwc: (N,H,W,Cin) -> (N,Ho,Wo,Cout)."""
    n = x_nhwc.shape[0]
    cout = w_oihw.shape[0]

    patches, ho, wo = _im2col(x_nhwc, stride)
    m, k = patches.shape
    tile_m = _pick_tile_m(m, k, cout)
    m_pad = _round_up(m, tile_m)
    num_tiles = m_pad // tile_m

    # bf16 MXU operands (f32 accumulation via preferred_element_type).
    patches = jnp.pad(patches, ((0, m_pad - m), (0, 0))).astype(jnp.bfloat16)
    # PyTorch weight (Cout,Cin,kh,kw) -> (kh,kw,Cin,Cout) -> (K,Cout); matches the
    # (ki,kj,ci) flattening order of `patches`.
    w_mat = jnp.transpose(w_oihw, (2, 3, 1, 0)).reshape(k, cout).astype(jnp.bfloat16)

    x_spec = pl.BlockSpec((tile_m, k), lambda i: (i, 0))
    w_spec = pl.BlockSpec((k, cout), lambda i: (0, 0))          # constant -> resident
    y_spec = pl.BlockSpec((tile_m, cout), lambda i: (i, 0))
    cparams = pltpu.CompilerParams(
        dimension_semantics=("parallel",),                      # megacore-shard M tiles
        vmem_limit_bytes=VMEM_LIMIT)
    cost = pl.CostEstimate(
        flops=2 * m_pad * k * cout, transcendentals=0,
        bytes_accessed=m_pad * k * 2 + k * cout * 2 + m_pad * cout * 4)

    use_bn = gamma is not None

    if not use_bn:
        # Fused matmul + bias (+ LeakyReLU).
        # TODO(synk): outputs with Cout < 128 (16 and 1 here) still use masked
        # stores; lane-dense packing of the matmul epilogue is not implemented.
        b2 = b.reshape(1, cout).astype(jnp.float32)
        y = pl.pallas_call(
            functools.partial(_conv_bias_kernel, use_act=use_act),
            out_shape=jax.ShapeDtypeStruct((m_pad, cout), jnp.float32),
            grid=(num_tiles,),
            in_specs=[x_spec, w_spec, pl.BlockSpec((1, cout), lambda i: (0, 0))],
            out_specs=y_spec,
            compiler_params=cparams,
            cost_estimate=cost,
        )(patches, w_mat, b2)
        out = y
    else:
        # --- pass 1: matmul + per-tile channel sum / sumsq (bias dropped: it is
        # cancelled exactly by the BN mean subtraction). ---
        stat_spec = pl.BlockSpec((1, 1, cout), lambda i: (i, 0, 0))
        y, psum, pssq = pl.pallas_call(
            _conv_stats_kernel,
            out_shape=(jax.ShapeDtypeStruct((m_pad, cout), jnp.float32),
                       jax.ShapeDtypeStruct((num_tiles, 1, cout), jnp.float32),
                       jax.ShapeDtypeStruct((num_tiles, 1, cout), jnp.float32)),
            grid=(num_tiles,),
            in_specs=[x_spec, w_spec],
            out_specs=(y_spec, stat_spec, stat_spec),
            compiler_params=cparams,
            cost_estimate=cost,
        )(patches, w_mat)

        # Tiny per-channel reduction over tile partials (pad rows contribute 0).
        s = jnp.sum(psum, axis=(0, 1))
        ss = jnp.sum(pssq, axis=(0, 1))
        mean = s / m
        var = ss / m - mean * mean
        inv = lax.rsqrt(var + BN_EPS)
        scale = gamma.astype(jnp.float32) * inv
        shift = beta.astype(jnp.float32) - mean * scale

        # --- pass 2: lane-dense normalize + LeakyReLU.  (M, Cout) is reinterpreted
        # row-major as (M/r, r*Cout) with r*Cout == 128; scale/shift tiled r times.
        r = 128 // cout
        if not (cout < 128 and 128 % cout == 0 and tile_m % r == 0
                and (tile_m // r) % 8 == 0):
            r = 1
        y2 = y.reshape(m_pad // r, r * cout)
        sc = jnp.tile(scale, r).reshape(1, r * cout)
        sh = jnp.tile(shift, r).reshape(1, r * cout)
        yb_spec = pl.BlockSpec((tile_m // r, r * cout), lambda i: (i, 0))
        out = pl.pallas_call(
            functools.partial(_scale_shift_act_kernel, use_act=use_act),
            out_shape=jax.ShapeDtypeStruct((m_pad // r, r * cout), jnp.float32),
            grid=(num_tiles,),
            in_specs=[yb_spec,
                      pl.BlockSpec((1, r * cout), lambda i: (0, 0)),
                      pl.BlockSpec((1, r * cout), lambda i: (0, 0))],
            out_specs=yb_spec,
            compiler_params=cparams,
        )(y2, sc, sh)
        out = out.reshape(m_pad, cout)

    return out[:m].reshape(n, ho, wo, cout)


# ----------------------------------------------------------------------------
# Full discriminator forward
# ----------------------------------------------------------------------------
def init_params(key, input_nc, ndf, n_layers):
    """Deterministic synthetic init (weights ~ N(0, 0.02), bias=0, gamma=1, beta=0)."""
    layers = []   # (w, b, gamma, beta, stride, use_act)

    def conv_params(k, cin, cout):
        w = 0.02 * jax.random.normal(k, (cout, cin, KW, KW), jnp.float32)
        b = jnp.zeros((cout,), jnp.float32)
        return w, b

    keys = jax.random.split(key, n_layers + 2)
    nf = ndf
    w, b = conv_params(keys[0], input_nc, nf)
    layers.append((w, b, None, None, 2, True))                      # conv + LeakyReLU
    for n in range(1, n_layers):
        nf_prev, nf = nf, min(nf * 2, 512)
        w, b = conv_params(keys[n], nf_prev, nf)
        layers.append((w, b, jnp.ones((nf,), jnp.float32),
                       jnp.zeros((nf,), jnp.float32), 2, True))      # conv + BN + LReLU
    nf_prev, nf = nf, min(nf * 2, 512)
    w, b = conv_params(keys[n_layers], nf_prev, nf)
    layers.append((w, b, jnp.ones((nf,), jnp.float32),
                   jnp.zeros((nf,), jnp.float32), 1, True))          # stride-1 conv + BN + LReLU
    w, b = conv_params(keys[n_layers + 1], nf, 1)
    layers.append((w, b, None, None, 1, False))                      # final 1-channel conv
    # TODO(synk): use_sigmoid=True / getIntermFeat=True variants not wired up (defaults False).
    return layers


def discriminator_forward(x_nchw, params):
    y = jnp.transpose(x_nchw, (0, 2, 3, 1))          # NCHW -> NHWC
    for (w, b, g, be, stride, use_act) in params:
        y = conv_layer_pallas(y, w, b, g, be, stride=stride, use_act=use_act)
    return jnp.transpose(y, (0, 3, 1, 2))            # NHWC -> NCHW


# ----------------------------------------------------------------------------
# Pure-JAX reference (lax.conv) with the same bf16-input / f32-accumulate policy
# ----------------------------------------------------------------------------
def reference_forward(x_nchw, params):
    y = x_nchw
    for (w, b, g, be, stride, use_act) in params:
        yl = lax.conv_general_dilated(
            y.astype(jnp.bfloat16), w.astype(jnp.bfloat16),
            (stride, stride), [(PADW, PADW), (PADW, PADW)],
            dimension_numbers=('NCHW', 'OIHW', 'NCHW'),
            preferred_element_type=jnp.float32)
        yl = yl + b[None, :, None, None]
        if g is not None:
            mean = yl.mean(axis=(0, 2, 3), keepdims=True)
            var = ((yl - mean) ** 2).mean(axis=(0, 2, 3), keepdims=True)
            yl = (yl - mean) * lax.rsqrt(var + BN_EPS)
            yl = yl * g[None, :, None, None] + be[None, :, None, None]
        if use_act:
            yl = jnp.where(yl > 0, yl, LRELU_SLOPE * yl)
        y = yl
    return y


if __name__ == "__main__":
    key = jax.random.PRNGKey(0)
    k_x, k_p = jax.random.split(key)

    N, INPUT_NC, H, W = 2, 4, 16, 16
    NDF, N_LAYERS = 16, 3

    x = jax.random.normal(k_x, (N, INPUT_NC, H, W), jnp.float32)
    params = init_params(k_p, INPUT_NC, NDF, N_LAYERS)

    out = jax.block_until_ready(discriminator_forward(x, params))
    ref = jax.block_until_ready(reference_forward(x, params))

    assert out.shape == (N, 1, 5, 5), out.shape
    err = float(jnp.max(jnp.abs(out - ref)))
    assert jnp.allclose(out, ref, atol=3e-3, rtol=3e-3), f"max abs err {err}"
    print("KERNEL_OK")
</pallas_src>

<mosaic_0001>
module attributes {stable_mosaic.version = 11 : i64} {
  func.func @_conv_bias_kernel(%arg0: i32, %arg1: memref<256x64xbf16, #tpu.memory_space<vmem>>, %arg2: memref<64x16xbf16, #tpu.memory_space<vmem>>, %arg3: memref<1x16xf32, #tpu.memory_space<vmem>>, %arg4: memref<256x16xf32, #tpu.memory_space<vmem>>) attributes {dimension_semantics = [#tpu.dimension_semantics<parallel>], iteration_bounds = array<i64: 1>, scalar_prefetch = 0 : i64, scratch_operands = 0 : i64, tpu.core_type = #tpu.core_type<tc>, window_params = [{transform_indices = @transform_0, window_bounds = array<i64: 256, 64>}, {pipeline_mode = #tpu.pipeline_mode<synchronous>, transform_indices = @transform_1, window_bounds = array<i64: 64, 16>}, {pipeline_mode = #tpu.pipeline_mode<synchronous>, transform_indices = @transform_2, window_bounds = array<i64: 1, 16>}, {transform_indices = @transform_3, window_bounds = array<i64: 256, 16>}]} {
    %c0 = arith.constant 0 : index
    %c0_0 = arith.constant 0 : index
    %0 = vector.load %arg1[%c0, %c0_0] : memref<256x64xbf16, #tpu.memory_space<vmem>>, vector<256x64xbf16>
    %c0_1 = arith.constant 0 : index
    %c0_2 = arith.constant 0 : index
    %1 = vector.load %arg2[%c0_1, %c0_2] : memref<64x16xbf16, #tpu.memory_space<vmem>>, vector<64x16xbf16>
    %cst = arith.constant dense<0.000000e+00> : vector<256x16xf32>
    %2 = tpu.matmul %0, %1, %cst {dimension_numbers = #tpu.dot_dimension_numbers<[1], [0], [0], [1], [0, 0, 1, 1], [], []>} : vector<256x64xbf16>, vector<64x16xbf16>, vector<256x16xf32> -> vector<256x16xf32>
    %c0_3 = arith.constant 0 : index
    %c0_4 = arith.constant 0 : index
    %3 = vector.load %arg3[%c0_3, %c0_4] : memref<1x16xf32, #tpu.memory_space<vmem>>, vector<1x16xf32>
    %4 = vector.broadcast %3 : vector<1x16xf32> to vector<256x16xf32>
    %5 = arith.addf %2, %4 : vector<256x16xf32>
    %cst_5 = arith.constant 0.000000e+00 : f32
    %6 = vector.broadcast %cst_5 : f32 to vector<256x16xf32>
    %7 = arith.cmpf ogt, %5, %6 : vector<256x16xf32>
    %cst_6 = arith.constant 2.000000e-01 : f32
    %8 = vector.broadcast %cst_6 : f32 to vector<256x16xf32>
    %9 = arith.mulf %8, %5 : vector<256x16xf32>
    %10 = arith.select %7, %5, %9 : vector<256x16xi1>, vector<256x16xf32>
    %c0_7 = arith.constant 0 : index
    %c0_8 = arith.constant 0 : index
    %11 = vector.load %arg4[%c0_7, %c0_8] : memref<256x16xf32, #tpu.memory_space<vmem>>, vector<256x16xf32>
    tpu.vector_store %arg4[%c0_7, %c0_8], %10 {strides = array<i32>} : memref<256x16xf32, #tpu.memory_space<vmem>>, vector<256x16xf32>,
    return
  }
  func.func @transform_0(%arg0: i32) -> (i32, i32) {
    %c0_i32 = arith.constant 0 : i32
    %c0_i32_0 = arith.constant 0 : i32
    return %arg0, %c0_i32 : i32, i32
  }
  func.func @transform_1(%arg0: i32) -> (i32, i32) {
    %c0_i32 = arith.constant 0 : i32
    %c0_i32_0 = arith.constant 0 : i32
    %c0_i32_1 = arith.constant 0 : i32
    return %c0_i32, %c0_i32_0 : i32, i32
  }
  func.func @transform_2(%arg0: i32) -> (i32, i32) {
    %c0_i32 = arith.constant 0 : i32
    %c0_i32_0 = arith.constant 0 : i32
    %c0_i32_1 = arith.constant 0 : i32
    return %c0_i32, %c0_i32_0 : i32, i32
  }
  func.func @transform_3(%arg0: i32) -> (i32, i32) {
    %c0_i32 = arith.constant 0 : i32
    %c0_i32_0 = arith.constant 0 : i32
    return %arg0, %c0_i32 : i32, i32
  }
}

</mosaic_0001>

<llo_original>
// kernel: tpu_custom_call.1
$region0: #{tpu_custom_call.1}
  #allocation0 [shape = 'u32[]', space=smem, size = 0x4, offset = 0x4, fixed_abs, tag = 'smem constant byte address 0x4 - core index']
  #allocation1 [shape = 'u32[144,128]{1,0:T(1,128)}', space=vmem, size = 0x12000, scoped, tag = 'internal scratch']
  %s0 = inlined_call_operand.vmem [shape: bf16[256,64], index: 0, kind: input, shape index: {}]
  %s1 = inlined_call_operand.vmem [shape: bf16[64,16], index: 1, kind: input, shape index: {}]
  %s2 = inlined_call_operand.vmem [shape: f32[1,16], index: 2, kind: input, shape index: {}]
  %s3 = inlined_call_operand.vmem [shape: f32[256,16], index: 3, kind: output, shape index: {}]
  %s4 = sld [smem:[#allocation0]]
  $region22: #{tpu_custom_call.1} parent=0
    _
  %s6 = ssub.s32 1, %s4
  %s7 = scalar_select 0, %s6, %s4
  // Predicated region
  $region2: #{tpu_custom_call.1} parent=0 // pred_check
    _
  $region3: #{tpu_custom_call.1} parent=0 // pred_check_branch
    %9 = sbr.rel (0) target = $region5
  $region4: #{tpu_custom_call.1} parent=0 // pred_region
    _
  $region5: #{tpu_custom_call.1} parent=0 // pred_fallthru
    _
  // Predicated region
  $region6: #{tpu_custom_call.1} parent=0 // pred_check
    _
  $region7: #{tpu_custom_call.1} parent=0 // pred_check_branch
    %11 = sbr.rel (0) target = $region9
  $region8: #{tpu_custom_call.1} parent=0 // pred_region
    _
  $region9: #{tpu_custom_call.1} parent=0 // pred_fallthru
    _
  // Predicated region
  $region10: #{tpu_custom_call.1} parent=0 // pred_check
    _
  $region11: #{tpu_custom_call.1} parent=0 // pred_check_branch
    %13 = sbr.rel (0) target = $region13
  $region12: #{tpu_custom_call.1} parent=0 // pred_region
    _
  $region13: #{tpu_custom_call.1} parent=0 // pred_fallthru
    _
  %v15 = vld [vmem:[%s0] sm:$0xf]
  %v16 = vld [vmem:[%s0 + $0x4] sm:$0xf]
  %v17 = vld [vmem:[%s0 + $0x8] sm:$0xf]
  %v18 = vld [vmem:[%s0 + $0xc] sm:$0xf]
  %v19 = vld [vmem:[%s0 + $0x10] sm:$0xf]
  %v20 = vld [vmem:[%s0 + $0x14] sm:$0xf]
  %v21 = vld [vmem:[%s0 + $0x18] sm:$0xf]
  %v22 = vld [vmem:[%s0 + $0x1c] sm:$0xf]
  %v23 = vld [vmem:[%s0 + $0x20] sm:$0xf]
  %v24 = vld [vmem:[%s0 + $0x24] sm:$0xf]
  %v25 = vld [vmem:[%s0 + $0x28] sm:$0xf]
  %v26 = vld [vmem:[%s0 + $0x2c] sm:$0xf]
  %v27 = vld [vmem:[%s0 + $0x30] sm:$0xf]
  %v28 = vld [vmem:[%s0 + $0x34] sm:$0xf]
  %v29 = vld [vmem:[%s0 + $0x38] sm:$0xf]
  %v30 = vld [vmem:[%s0 + $0x3c] sm:$0xf]
  %v31 = vld [vmem:[%s0 + $0x40] sm:$0xf]
  %v32 = vld [vmem:[%s0 + $0x44] sm:$0xf]
  %v33 = vld [vmem:[%s0 + $0x48] sm:$0xf]
  %v34 = vld [vmem:[%s0 + $0x4c] sm:$0xf]
  %v35 = vld [vmem:[%s0 + $0x50] sm:$0xf]
  %v36 = vld [vmem:[%s0 + $0x54] sm:$0xf]
  %v37 = vld [vmem:[%s0 + $0x58] sm:$0xf]
  %v38 = vld [vmem:[%s0 + $0x5c] sm:$0xf]
  %v39 = vld [vmem:[%s0 + $0x60] sm:$0xf]
  %v40 = vld [vmem:[%s0 + $0x64] sm:$0xf]
  %v41 = vld [vmem:[%s0 + $0x68] sm:$0xf]
  %v42 = vld [vmem:[%s0 + $0x6c] sm:$0xf]
  %v43 = vld [vmem:[%s0 + $0x70] sm:$0xf]
  %v44 = vld [vmem:[%s0 + $0x74] sm:$0xf]
  %v45 = vld [vmem:[%s0 + $0x78] sm:$0xf]
  %v46 = vld [vmem:[%s0 + $0x7c] sm:$0xf]
  %v47 = vld [vmem:[%s1] sm:$0xf]
  %v48 = vld [vmem:[%s1 + $0x4] sm:$0xf]
  %v49 = vld [vmem:[%s1 + $0x8] sm:$0xf]
  %v50 = vld [vmem:[%s1 + $0xc] sm:$0xf]
  %v51 = vld [vmem:[%s1 + $0x10] sm:$0xf]
  %v52 = vld [vmem:[%s1 + $0x14] sm:$0xf]
  %v53 = vld [vmem:[%s1 + $0x18] sm:$0xf]
  %v54 = vld [vmem:[%s1 + $0x1c] sm:$0xf]
  %v55 = vld [vmem:[%s2] sm:$0x1]
  %v57 = vlaneseq
  %v58 = vshrl.u32 %v57, 7
  %v59 = vsub.s32 0, %v58
  %v60 = vrot.slane %v55, %v59
  %v94 = vunpack.c.l.b16 %v15
  %v95 = vunpack.c.l.b16 %v16
  %v96 = vunpack.c.l.b16 %v17
  %v97 = vunpack.c.l.b16 %v18
  %v98 = vunpack.c.l.b16 %v19
  %v99 = vunpack.c.l.b16 %v20
  %v100 = vunpack.c.l.b16 %v21
  %v101 = vunpack.c.l.b16 %v22
  %v102 = vunpack.c.l.b16 %v23
  %v103 = vunpack.c.l.b16 %v24
  %v104 = vunpack.c.l.b16 %v25
  %v105 = vunpack.c.l.b16 %v26
  %v106 = vunpack.c.l.b16 %v27
  %v107 = vunpack.c.l.b16 %v28
  %v108 = vunpack.c.l.b16 %v29
  %v109 = vunpack.c.l.b16 %v30
  %v110 = vunpack.c.l.b16 %v31
  %v111 = vunpack.c.l.b16 %v32
  %v112 = vunpack.c.l.b16 %v33
  %v113 = vunpack.c.l.b16 %v34
  %v114 = vunpack.c.l.b16 %v35
  %v115 = vunpack.c.l.b16 %v36
  %v116 = vunpack.c.l.b16 %v37
  %v117 = vunpack.c.l.b16 %v38
  %v118 = vunpack.c.l.b16 %v39
  %v119 = vunpack.c.l.b16 %v40
  %v120 = vunpack.c.l.b16 %v41
  %v121 = vunpack.c.l.b16 %v42
  %v122 = vunpack.c.l.b16 %v43
  %v123 = vunpack.c.l.b16 %v44
  %v124 = vunpack.c.l.b16 %v45
  %v125 = vunpack.c.l.b16 %v46
  %v126 = vpack.c.b16 %v95, %v94
  %v127 = vpack.c.b16 %v97, %v96
  %v128 = vpack.c.b16 %v99, %v98
  %v129 = vpack.c.b16 %v101, %v100
  %v130 = vpack.c.b16 %v103, %v102
  %v131 = vpack.c.b16 %v105, %v104
  %v132 = vpack.c.b16 %v107, %v106
  %v133 = vpack.c.b16 %v109, %v108
  %v134 = vpack.c.b16 %v111, %v110
  %v135 = vpack.c.b16 %v113, %v112
  %v136 = vpack.c.b16 %v115, %v114
  %v137 = vpack.c.b16 %v117, %v116
  %v138 = vpack.c.b16 %v119, %v118
  %v139 = vpack.c.b16 %v121, %v120
  %v140 = vpack.c.b16 %v123, %v122
  %v141 = vpack.c.b16 %v125, %v124
  %v150 = vunpack.c.l.b16 %v47
  %v151 = vunpack.c.l.b16 %v48
  %v152 = vunpack.c.l.b16 %v49
  %v153 = vunpack.c.l.b16 %v50
  %v154 = vunpack.c.l.b16 %v51
  %v155 = vunpack.c.l.b16 %v52
  %v156 = vunpack.c.l.b16 %v53
  %v157 = vunpack.c.l.b16 %v54
  %v158 = vpack.c.b16 %v151, %v150
  %v159 = vpack.c.b16 %v153, %v152
  %v160 = vpack.c.b16 %v155, %v154
  %v161 = vpack.c.b16 %v157, %v156
  %vm166 = vcmask 523264
  %v168 = vsel %vm166, %v126, 0
  %v171 = vsel %vm166, %v127, 0
  %v174 = vsel %vm166, %v128, 0
  %v177 = vsel %vm166, %v129, 0
  %v180 = vsel %vm166, %v130, 0
  %v183 = vsel %vm166, %v131, 0
  %v186 = vsel %vm166, %v132, 0
  %v189 = vsel %vm166, %v133, 0
  %v192 = vsel %vm166, %v134, 0
  %v195 = vsel %vm166, %v135, 0
  %v198 = vsel %vm166, %v136, 0
  %v201 = vsel %vm166, %v137, 0
  %v204 = vsel %vm166, %v138, 0
  %v207 = vsel %vm166, %v139, 0
  %v210 = vsel %vm166, %v140, 0
  %v213 = vsel %vm166, %v141, 0
  %215 = vmatprep.subr.bf16.mxu0 0
  %216 = vmatpush1.bf16.msra.mxu0 %v158
  %217 = vmatprep.subr.bf16.mxu0 0
  %218 = vmatpush1.bf16.msra.mxu0 %v159
  %219 = vmatprep.subr.bf16.mxu0 0
  %220 = vmatpush1.bf16.msra.mxu0 %v160
  %221 = vmatprep.subr.bf16.mxu0 0
  %222 = vmatpush1.bf16.msra.mxu0 %v161
  %223 = vmatprep.subr.bf16.mxu0 0
  %224 = vmatpush1.bf16.msra.mxu0 0
  %225 = vmatprep.subr.bf16.mxu0 0
  %226 = vmatpush1.bf16.msra.mxu0 0
  %227 = vmatprep.subr.bf16.mxu0 0
  %228 = vmatpush1.bf16.msra.mxu0 0
  %229 = vmatprep.subr.bf16.mxu0 0
  %230 = vmatpush1.bf16.msra.mxu0 0
  %231 = vmatprep.subr.bf16.mxu0 0
  %232 = vmatpush1.bf16.msra.mxu0 0
  %233 = vmatprep.subr.bf16.mxu0 0
  %234 = vmatpush1.bf16.msra.mxu0 0
  %235 = vmatprep.subr.bf16.mxu0 0
  %236 = vmatpush1.bf16.msra.mxu0 0
  %237 = vmatprep.subr.bf16.mxu0 0
  %238 = vmatpush1.bf16.msra.mxu0 0
  %239 = vmatprep.subr.bf16.mxu0 0
  %240 = vmatpush1.bf16.msra.mxu0 0
  %241 = vmatprep.subr.bf16.mxu0 0
  %242 = vmatpush1.bf16.msra.mxu0 0
  %243 = vmatprep.subr.bf16.mxu0 0
  %244 = vmatpush1.bf16.msra.mxu0 0
  %245 = vmatprep.subr.bf16.mxu0 0
  %246 = vmatpush1.bf16.msra.mxu0 0
  %247 = vmatprep.mubr.bf16.mxu0 0
  %248 = vmatmul.mubr.bf16.gmra.mrb[0].mxu0 %v168
  %v249 = vpop.f32.mrb[0].mxu0
  %v250 = vadd.f32 %v60, %v249
  %v251 = vpop.f32.mrb[0].mxu0
  %v252 = vpop.f32.mrb[0].mxu0
  %v253 = vadd.f32 %v60, %v252
  %v254 = vpop.f32.mrb[0].mxu0
  %255 = vmatprep.mubr.bf16.mxu0 0
  %256 = vmatmul.mubr.bf16.gmra.mrb[0].mxu0 %v171
  %v257 = vpop.f32.mrb[0].mxu0
  %v258 = vadd.f32 %v60, %v257
  %v259 = vpop.f32.mrb[0].mxu0
  %v260 = vpop.f32.mrb[0].mxu0
  %v261 = vadd.f32 %v60, %v260
  %v262 = vpop.f32.mrb[0].mxu0
  %263 = vmatprep.mubr.bf16.mxu0 0
  %264 = vmatmul.mubr.bf16.gmra.mrb[0].mxu0 %v174
  %v265 = vpop.f32.mrb[0].mxu0
  %v266 = vadd.f32 %v60, %v265
  %v267 = vpop.f32.mrb[0].mxu0
  %v268 = vpop.f32.mrb[0].mxu0
  %v269 = vadd.f32 %v60, %v268
  %v270 = vpop.f32.mrb[0].mxu0
  %271 = vmatprep.mubr.bf16.mxu0 0
  %272 = vmatmul.mubr.bf16.gmra.mrb[0].mxu0 %v177
  %v273 = vpop.f32.mrb[0].mxu0
  %v274 = vadd.f32 %v60, %v273
  %v275 = vpop.f32.mrb[0].mxu0
  %v276 = vpop.f32.mrb[0].mxu0
  %v277 = vadd.f32 %v60, %v276
  %v278 = vpop.f32.mrb[0].mxu0
  %279 = vmatprep.mubr.bf16.mxu0 0
  %280 = vmatmul.mubr.bf16.gmra.mrb[0].mxu0 %v180
  %v281 = vpop.f32.mrb[0].mxu0
  %v282 = vadd.f32 %v60, %v281
  %v283 = vpop.f32.mrb[0].mxu0
  %v284 = vpop.f32.mrb[0].mxu0
  %v285 = vadd.f32 %v60, %v284
  %v286 = vpop.f32.mrb[0].mxu0
  %287 = vmatprep.mubr.bf16.mxu0 0
  %288 = vmatmul.mubr.bf16.gmra.mrb[0].mxu0 %v183
  %v289 = vpop.f32.mrb[0].mxu0
  %v290 = vadd.f32 %v60, %v289
  %v291 = vpop.f32.mrb[0].mxu0
  %v292 = vpop.f32.mrb[0].mxu0
  %v293 = vadd.f32 %v60, %v292
  %v294 = vpop.f32.mrb[0].mxu0
  %295 = vmatprep.mubr.bf16.mxu0 0
  %296 = vmatmul.mubr.bf16.gmra.mrb[0].mxu0 %v186
  %v297 = vpop.f32.mrb[0].mxu0
  %v298 = vadd.f32 %v60, %v297
  %v299 = vpop.f32.mrb[0].mxu0
  %v300 = vpop.f32.mrb[0].mxu0
  %v301 = vadd.f32 %v60, %v300
  %v302 = vpop.f32.mrb[0].mxu0
  %303 = vmatprep.mubr.bf16.mxu0 0
  %304 = vmatmul.mubr.bf16.gmra.mrb[0].mxu0 %v189
  %v305 = vpop.f32.mrb[0].mxu0
  %v306 = vadd.f32 %v60, %v305
  %v307 = vpop.f32.mrb[0].mxu0
  %v308 = vpop.f32.mrb[0].mxu0
  %v309 = vadd.f32 %v60, %v308
  %v310 = vpop.f32.mrb[0].mxu0
  %311 = vmatprep.mubr.bf16.mxu0 0
  %312 = vmatmul.mubr.bf16.gmra.mrb[0].mxu0 %v192
  %v313 = vpop.f32.mrb[0].mxu0
  %v314 = vadd.f32 %v60, %v313
  %v315 = vpop.f32.mrb[0].mxu0
  %v316 = vpop.f32.mrb[0].mxu0
  %v317 = vadd.f32 %v60, %v316
  %v318 = vpop.f32.mrb[0].mxu0
  %319 = vmatprep.mubr.bf16.mxu0 0
  %320 = vmatmul.mubr.bf16.gmra.mrb[0].mxu0 %v195
  %v321 = vpop.f32.mrb[0].mxu0
  %v322 = vadd.f32 %v60, %v321
  %v323 = vpop.f32.mrb[0].mxu0
  %v324 = vpop.f32.mrb[0].mxu0
  %v325 = vadd.f32 %v60, %v324
  %v326 = vpop.f32.mrb[0].mxu0
  %327 = vmatprep.mubr.bf16.mxu0 0
  %328 = vmatmul.mubr.bf16.gmra.mrb[0].mxu0 %v198
  %v329 = vpop.f32.mrb[0].mxu0
  %v330 = vadd.f32 %v60, %v329
  %v331 = vpop.f32.mrb[0].mxu0
  %v332 = vpop.f32.mrb[0].mxu0
  %v333 = vadd.f32 %v60, %v332
  %v334 = vpop.f32.mrb[0].mxu0
  %335 = vmatprep.mubr.bf16.mxu0 0
  %336 = vmatmul.mubr.bf16.gmra.mrb[0].mxu0 %v201
  %v337 = vpop.f32.mrb[0].mxu0
  %v338 = vadd.f32 %v60, %v337
  %v339 = vpop.f32.mrb[0].mxu0
  %v340 = vpop.f32.mrb[0].mxu0
  %v341 = vadd.f32 %v60, %v340
  %v342 = vpop.f32.mrb[0].mxu0
  %343 = vmatprep.mubr.bf16.mxu0 0
  %344 = vmatmul.mubr.bf16.gmra.mrb[0].mxu0 %v204
  %v345 = vpop.f32.mrb[0].mxu0
  %v346 = vadd.f32 %v60, %v345
  %v347 = vpop.f32.mrb[0].mxu0
  %v348 = vpop.f32.mrb[0].mxu0
  %v349 = vadd.f32 %v60, %v348
  %v350 = vpop.f32.mrb[0].mxu0
  %351 = vmatprep.mubr.bf16.mxu0 0
  %352 = vmatmul.mubr.bf16.gmra.mrb[0].mxu0 %v207
  %v353 = vpop.f32.mrb[0].mxu0
  %v354 = vadd.f32 %v60, %v353
  %v355 = vpop.f32.mrb[0].mxu0
  %v356 = vpop.f32.mrb[0].mxu0
  %v357 = vadd.f32 %v60, %v356
  %v358 = vpop.f32.mrb[0].mxu0
  %359 = vmatprep.mubr.bf16.mxu0 0
  %360 = vmatmul.mubr.bf16.gmra.mrb[0].mxu0 %v210
  %v361 = vpop.f32.mrb[0].mxu0
  %v362 = vadd.f32 %v60, %v361
  %v363 = vpop.f32.mrb[0].mxu0
  %v364 = vpop.f32.mrb[0].mxu0
  %v365 = vadd.f32 %v60, %v364
  %v366 = vpop.f32.mrb[0].mxu0
  %367 = vmatprep.mubr.bf16.mxu0 0
  %368 = vmatmul.mubr.bf16.gmra.mrb[0].mxu0 %v213
  %v369 = vpop.f32.mrb[0].mxu0
  %v370 = vadd.f32 %v60, %v369
  %v371 = vpop.f32.mrb[0].mxu0
  %v372 = vpop.f32.mrb[0].mxu0
  %v373 = vadd.f32 %v60, %v372
  %v374 = vpop.f32.mrb[0].mxu0
  %375 = vdwg.mxu0
  %vm376 = vcmp.gt.f32.partialorder %v250, 0.0
  %vm377 = vcmp.gt.f32.partialorder %v253, 0.0
  %vm378 = vcmp.gt.f32.partialorder %v258, 0.0
  %vm379 = vcmp.gt.f32.partialorder %v261, 0.0
  %vm380 = vcmp.gt.f32.partialorder %v266, 0.0
  %vm381 = vcmp.gt.f32.partialorder %v269, 0.0
  %vm382 = vcmp.gt.f32.partialorder %v274, 0.0
  %vm383 = vcmp.gt.f32.partialorder %v277, 0.0
  %vm384 = vcmp.gt.f32.partialorder %v282, 0.0
  %vm385 = vcmp.gt.f32.partialorder %v285, 0.0
  %vm386 = vcmp.gt.f32.partialorder %v290, 0.0
  %vm387 = vcmp.gt.f32.partialorder %v293, 0.0
  %vm388 = vcmp.gt.f32.partialorder %v298, 0.0
  %vm389 = vcmp.gt.f32.partialorder %v301, 0.0
  %vm390 = vcmp.gt.f32.partialorder %v306, 0.0
  %vm391 = vcmp.gt.f32.partialorder %v309, 0.0
  %vm392 = vcmp.gt.f32.partialorder %v314, 0.0
  %vm393 = vcmp.gt.f32.partialorder %v317, 0.0
  %vm394 = vcmp.gt.f32.partialorder %v322, 0.0
  %vm395 = vcmp.gt.f32.partialorder %v325, 0.0
  %vm396 = vcmp.gt.f32.partialorder %v330, 0.0
  %vm397 = vcmp.gt.f32.partialorder %v333, 0.0
  %vm398 = vcmp.gt.f32.partialorder %v338, 0.0
  %vm399 = vcmp.gt.f32.partialorder %v341, 0.0
  %vm400 = vcmp.gt.f32.partialorder %v346, 0.0
  %vm401 = vcmp.gt.f32.partialorder %v349, 0.0
  %vm402 = vcmp.gt.f32.partialorder %v354, 0.0
  %vm403 = vcmp.gt.f32.partialorder %v357, 0.0
  %vm404 = vcmp.gt.f32.partialorder %v362, 0.0
  %vm405 = vcmp.gt.f32.partialorder %v365, 0.0
  %vm406 = vcmp.gt.f32.partialorder %v370, 0.0
  %vm407 = vcmp.gt.f32.partialorder %v373, 0.0
  %v408 = vmul.f32 %v250, 0.2
  %v409 = vmul.f32 %v253, 0.2
  %v410 = vmul.f32 %v258, 0.2
  %v411 = vmul.f32 %v261, 0.2
  %v412 = vmul.f32 %v266, 0.2
  %v413 = vmul.f32 %v269, 0.2
  %v414 = vmul.f32 %v274, 0.2
  %v415 = vmul.f32 %v277, 0.2
  %v416 = vmul.f32 %v282, 0.2
  %v417 = vmul.f32 %v285, 0.2
  %v418 = vmul.f32 %v290, 0.2
  %v419 = vmul.f32 %v293, 0.2
  %v420 = vmul.f32 %v298, 0.2
  %v421 = vmul.f32 %v301, 0.2
  %v422 = vmul.f32 %v306, 0.2
  %v423 = vmul.f32 %v309, 0.2
  %v424 = vmul.f32 %v314, 0.2
  %v425 = vmul.f32 %v317, 0.2
  %v426 = vmul.f32 %v322, 0.2
  %v427 = vmul.f32 %v325, 0.2
  %v428 = vmul.f32 %v330, 0.2
  %v429 = vmul.f32 %v333, 0.2
  %v430 = vmul.f32 %v338, 0.2
  %v431 = vmul.f32 %v341, 0.2
  %v432 = vmul.f32 %v346, 0.2
  %v433 = vmul.f32 %v349, 0.2
  %v434 = vmul.f32 %v354, 0.2
  %v435 = vmul.f32 %v357, 0.2
  %v436 = vmul.f32 %v362, 0.2
  %v437 = vmul.f32 %v365, 0.2
  %v438 = vmul.f32 %v370, 0.2
  %v439 = vmul.f32 %v373, 0.2
  %v440 = vsel %vm376, %v250, %v408
  %v441 = vsel %vm377, %v253, %v409
  %v442 = vsel %vm378, %v258, %v410
  %v443 = vsel %vm379, %v261, %v411
  %v444 = vsel %vm380, %v266, %v412
  %v445 = vsel %vm381, %v269, %v413
  %v446 = vsel %vm382, %v274, %v414
  %v447 = vsel %vm383, %v277, %v415
  %v448 = vsel %vm384, %v282, %v416
  %v449 = vsel %vm385, %v285, %v417
  %v450 = vsel %vm386, %v290, %v418
  %v451 = vsel %vm387, %v293, %v419
  %v452 = vsel %vm388, %v298, %v420
  %v453 = vsel %vm389, %v301, %v421
  %v454 = vsel %vm390, %v306, %v422
  %v455 = vsel %vm391, %v309, %v423
  %v456 = vsel %vm392, %v314, %v424
  %v457 = vsel %vm393, %v317, %v425
  %v458 = vsel %vm394, %v322, %v426
  %v459 = vsel %vm395, %v325, %v427
  %v460 = vsel %vm396, %v330, %v428
  %v461 = vsel %vm397, %v333, %v429
  %v462 = vsel %vm398, %v338, %v430
  %v463 = vsel %vm399, %v341, %v431
  %v464 = vsel %vm400, %v346, %v432
  %v465 = vsel %vm401, %v349, %v433
  %v466 = vsel %vm402, %v354, %v434
  %v467 = vsel %vm403, %v357, %v435
  %v468 = vsel %vm404, %v362, %v436
  %v469 = vsel %vm405, %v365, %v437
  %v470 = vsel %vm406, %v370, %v438
  %v471 = vsel %vm407, %v373, %v439
  %vm472 = vcmask 130048
  %473 = vst.msk [vmem:[%s3] sm:$0xff] %vm472, %v440
  %474 = vst.msk [vmem:[%s3 + $0x8] sm:$0xff] %vm472, %v441
  %475 = vst.msk [vmem:[%s3 + $0x10] sm:$0xff] %vm472, %v442
  %476 = vst.msk [vmem:[%s3 + $0x18] sm:$0xff] %vm472, %v443
  %477 = vst.msk [vmem:[%s3 + $0x20] sm:$0xff] %vm472, %v444
  %478 = vst.msk [vmem:[%s3 + $0x28] sm:$0xff] %vm472, %v445
  %479 = vst.msk [vmem:[%s3 + $0x30] sm:$0xff] %vm472, %v446
  %480 = vst.msk [vmem:[%s3 + $0x38] sm:$0xff] %vm472, %v447
  %481 = vst.msk [vmem:[%s3 + $0x40] sm:$0xff] %vm472, %v448
  %482 = vst.msk [vmem:[%s3 + $0x48] sm:$0xff] %vm472, %v449
  %483 = vst.msk [vmem:[%s3 + $0x50] sm:$0xff] %vm472, %v450
  %484 = vst.msk [vmem:[%s3 + $0x58] sm:$0xff] %vm472, %v451
  %485 = vst.msk [vmem:[%s3 + $0x60] sm:$0xff] %vm472, %v452
  %486 = vst.msk [vmem:[%s3 + $0x68] sm:$0xff] %vm472, %v453
  %487 = vst.msk [vmem:[%s3 + $0x70] sm:$0xff] %vm472, %v454
  %488 = vst.msk [vmem:[%s3 + $0x78] sm:$0xff] %vm472, %v455
  %489 = vst.msk [vmem:[%s3 + $0x80] sm:$0xff] %vm472, %v456
  %490 = vst.msk [vmem:[%s3 + $0x88] sm:$0xff] %vm472, %v457
  %491 = vst.msk [vmem:[%s3 + $0x90] sm:$0xff] %vm472, %v458
  %492 = vst.msk [vmem:[%s3 + $0x98] sm:$0xff] %vm472, %v459
  %493 = vst.msk [vmem:[%s3 + $0xa0] sm:$0xff] %vm472, %v460
  %494 = vst.msk [vmem:[%s3 + $0xa8] sm:$0xff] %vm472, %v461
  %495 = vst.msk [vmem:[%s3 + $0xb0] sm:$0xff] %vm472, %v462
  %496 = vst.msk [vmem:[%s3 + $0xb8] sm:$0xff] %vm472, %v463
  %497 = vst.msk [vmem:[%s3 + $0xc0] sm:$0xff] %vm472, %v464
  %498 = vst.msk [vmem:[%s3 + $0xc8] sm:$0xff] %vm472, %v465
  %499 = vst.msk [vmem:[%s3 + $0xd0] sm:$0xff] %vm472, %v466
  %500 = vst.msk [vmem:[%s3 + $0xd8] sm:$0xff] %vm472, %v467
  %501 = vst.msk [vmem:[%s3 + $0xe0] sm:$0xff] %vm472, %v468
  %502 = vst.msk [vmem:[%s3 + $0xe8] sm:$0xff] %vm472, %v469
  %503 = vst.msk [vmem:[%s3 + $0xf0] sm:$0xff] %vm472, %v470
  %504 = vst.msk [vmem:[%s3 + $0xf8] sm:$0xff] %vm472, %v471
  // Predicated region
  $region14: #{tpu_custom_call.1} parent=0 // pred_check
    _
  $region15: #{tpu_custom_call.1} parent=0 // pred_check_branch
    %506 = sbr.rel (0) target = $region17
  $region16: #{tpu_custom_call.1} parent=0 // pred_region
    _
  $region17: #{tpu_custom_call.1} parent=0 // pred_fallthru
    _
  // Predicated region
  $region18: #{tpu_custom_call.1} parent=0 // pred_check
    _
  $region19: #{tpu_custom_call.1} parent=0 // pred_check_branch
    %508 = sbr.rel (0) target = $region21
  $region20: #{tpu_custom_call.1} parent=0 // pred_region
    _
  $region21: #{tpu_custom_call.1} parent=0 // pred_fallthru
    _

</llo_original>
